<compile_context>
chip_gen: v6e
topology: v6e:2x2x1
jax: 0.10.0
libtpu: 0.0.40
codegen_flags: <defaults>
</compile_context>

<pallas_src>
import functools

import jax
import jax.numpy as jnp
from jax import lax
from jax.experimental import pallas as pl
from jax.experimental.pallas import tpu as pltpu

_LANE = 128             # TPU vreg lane width; values are viewed as (rows, 128)
_MAX_BLOCK_ROWS = 2048  # 2048 * 128 * 4 B = 1 MiB f32 per block


def _edge_drop_kernel(seed_ref, val_ref, out_ref, *, edge_drop, block_rows):
    """Zero each value independently with probability `edge_drop`."""
    i = pl.program_id(0)

    # Global element index of each slot in this (block_rows, 128) tile.
    row = lax.broadcasted_iota(jnp.int32, val_ref.shape, 0)
    col = lax.broadcasted_iota(jnp.int32, val_ref.shape, 1)
    gidx = (i * block_rows + row) * _LANE + col

    # Mix the seed in (scalar math on the scalar core), then a lowbias32-style
    # integer hash -> well-mixed 32 random bits per element.  Pure VPU ops:
    # xor / logical shift / wrapping multiply - lowers on TPU and in interpret.
    seed_u = seed_ref[0].astype(jnp.uint32)
    salt = jnp.uint32(0x9E3779B9) * (seed_u + jnp.uint32(1))
    x = gidx.astype(jnp.uint32) + salt
    x = x ^ (x >> jnp.uint32(16))
    x = x * jnp.uint32(0x7FEB352D)
    x = x ^ (x >> jnp.uint32(15))
    x = x * jnp.uint32(0x846CA68B)
    x = x ^ (x >> jnp.uint32(16))

    # Top 24 bits as a non-negative int32 in [0, 2^24): "rand" scaled by 2^24.
    hi = (x >> jnp.uint32(8)).astype(jnp.int32)

    # rand + edge_drop > 1.0  <=>  rand > 1 - edge_drop  <=>  hi > (1-p)*2^24
    thresh = jnp.int32(int((1.0 - float(edge_drop)) * float(1 << 24)))
    drop = hi > thresh

    v = val_ref[...]
    out_ref[...] = jnp.where(drop, jnp.zeros_like(v), v)


def sparse_edge_drop(indices, values, edge_drop, seed=0):
    """JAX/Pallas equivalent of SparseEdgeDrop.forward.

    indices: int32 [2, nnz]   (pass-through, returned unchanged)
    values : float32 [nnz]
    Returns (indices, new_values).
    """
    nnz = values.shape[0]
    rows = pl.cdiv(nnz, _LANE)
    padded = rows * _LANE

    # Lane-dense (rows, 128) view.  (Keep this layout resident across the
    # surrounding graph code to avoid the pad/slice copies entirely.)
    vals2d = jnp.pad(values, (0, padded - nnz)).reshape(rows, _LANE)

    if rows <= _MAX_BLOCK_ROWS:
        block_rows = int(rows)          # single (possibly partial) block
        grid = (1,)
    else:
        block_rows = _MAX_BLOCK_ROWS    # multiple of 8 -> valid sublane tiling
        grid = (pl.cdiv(rows, block_rows),)

    seed_arr = jnp.asarray([seed], dtype=jnp.int32)
    kernel = functools.partial(
        _edge_drop_kernel, edge_drop=float(edge_drop), block_rows=block_rows)

    out2d = pl.pallas_call(
        kernel,
        out_shape=jax.ShapeDtypeStruct(vals2d.shape, values.dtype),
        grid=grid,
        in_specs=[
            pl.BlockSpec(memory_space=pltpu.SMEM),                # seed scalar
            pl.BlockSpec((block_rows, _LANE), lambda i: (i, 0)),  # values tile
        ],
        out_specs=pl.BlockSpec((block_rows, _LANE), lambda i: (i, 0)),
        compiler_params=pltpu.CompilerParams(
            dimension_semantics=("parallel",)),
        cost_estimate=pl.CostEstimate(
            flops=12 * padded, transcendentals=0, bytes_accessed=8 * padded),
    )(seed_arr, vals2d)

    new_values = out2d.reshape(-1)[:nnz]
    return indices, new_values


if __name__ == "__main__":
    key = jax.random.PRNGKey(0)
    k_idx, k_val = jax.random.split(key)

    # Small synthetic sparse adjacency: 32 nodes, 1000 nonzero edges.
    num_nodes = 32
    nnz = 1000
    indices = jax.random.randint(k_idx, (2, nnz), 0, num_nodes, dtype=jnp.int32)
    values = jax.random.uniform(k_val, (nnz,), dtype=jnp.float32) + 0.1

    edge_drop = 0.3
    out_indices, out_values = sparse_edge_drop(indices, values, edge_drop, seed=0)
    out_values = jax.block_until_ready(out_values)

    # Sanity: every output value is either 0 or equals the input value,
    # indices pass through untouched, and the drop mask is non-trivial.
    same = jnp.isclose(out_values, values)
    zeroed = out_values == 0.0
    assert bool(jnp.all(same | zeroed))
    assert out_indices.shape == (2, nnz)
    assert bool(jnp.any(zeroed)) and bool(jnp.any(same))

    print("KERNEL_OK")
</pallas_src>

<mosaic_0001>
module attributes {stable_mosaic.version = 11 : i64} {
  func.func @_edge_drop_kernel(%arg0: i32, %arg1: memref<1xi32, #tpu.memory_space<smem>>, %arg2: memref<8x128xf32, #tpu.memory_space<vmem>>, %arg3: memref<8x128xf32, #tpu.memory_space<vmem>>) attributes {dimension_semantics = [#tpu.dimension_semantics<parallel>], iteration_bounds = array<i64: 1>, scalar_prefetch = 0 : i64, scratch_operands = 0 : i64, tpu.core_type = #tpu.core_type<tc>, window_params = [{transform_indices = @transform_0, window_bounds = array<i64: 1>}, {transform_indices = @transform_1, window_bounds = array<i64: 8, 128>}, {transform_indices = @transform_2, window_bounds = array<i64: 8, 128>}]} {
    %0 = tpu.iota {dimensions = array<i32: 0>} : vector<8x128xi32>
    %1 = tpu.iota {dimensions = array<i32: 1>} : vector<8x128xi32>
    %c8_i32 = arith.constant 8 : i32
    %2 = arith.muli %arg0, %c8_i32 : i32
    %3 = vector.broadcast %2 : i32 to vector<8x128xi32>
    %4 = arith.addi %3, %0 : vector<8x128xi32>
    %c128_i32 = arith.constant 128 : i32
    %5 = vector.broadcast %c128_i32 : i32 to vector<8x128xi32>
    %6 = arith.muli %4, %5 : vector<8x128xi32>
    %7 = arith.addi %6, %1 : vector<8x128xi32>
    %c0 = arith.constant 0 : index
    %8 = memref.load %arg1[%c0] : memref<1xi32, #tpu.memory_space<smem>>
    %c1_i32 = arith.constant 1 : i32
    %9 = arith.addi %8, %c1_i32 : i32
    %c-1640531527_i32 = arith.constant -1640531527 : i32
    %10 = arith.muli %c-1640531527_i32, %9 : i32
    %11 = vector.broadcast %10 : i32 to vector<8x128xi32>
    %12 = arith.addi %7, %11 : vector<8x128xi32>
    %c16_i32 = arith.constant 16 : i32
    %13 = vector.broadcast %c16_i32 : i32 to vector<8x128xi32>
    %14 = arith.shrui %12, %13 : vector<8x128xi32>
    %15 = arith.xori %12, %14 : vector<8x128xi32>
    %c2146121005_i32 = arith.constant 2146121005 : i32
    %16 = vector.broadcast %c2146121005_i32 : i32 to vector<8x128xi32>
    %17 = arith.muli %15, %16 : vector<8x128xi32>
    %c15_i32 = arith.constant 15 : i32
    %18 = vector.broadcast %c15_i32 : i32 to vector<8x128xi32>
    %19 = arith.shrui %17, %18 : vector<8x128xi32>
    %20 = arith.xori %17, %19 : vector<8x128xi32>
    %c-2073254261_i32 = arith.constant -2073254261 : i32
    %21 = vector.broadcast %c-2073254261_i32 : i32 to vector<8x128xi32>
    %22 = arith.muli %20, %21 : vector<8x128xi32>
    %c16_i32_0 = arith.constant 16 : i32
    %23 = vector.broadcast %c16_i32_0 : i32 to vector<8x128xi32>
    %24 = arith.shrui %22, %23 : vector<8x128xi32>
    %25 = arith.xori %22, %24 : vector<8x128xi32>
    %c8_i32_1 = arith.constant 8 : i32
    %26 = vector.broadcast %c8_i32_1 : i32 to vector<8x128xi32>
    %27 = arith.shrui %25, %26 : vector<8x128xi32>
    %c11744051_i32 = arith.constant 11744051 : i32
    %28 = vector.broadcast %c11744051_i32 : i32 to vector<8x128xi32>
    %29 = arith.cmpi sgt, %27, %28 : vector<8x128xi32>
    %c0_2 = arith.constant 0 : index
    %c0_3 = arith.constant 0 : index
    %30 = vector.load %arg2[%c0_2, %c0_3] : memref<8x128xf32, #tpu.memory_space<vmem>>, vector<8x128xf32>
    %cst = arith.constant 0.000000e+00 : f32
    %31 = vector.broadcast %cst : f32 to vector<8x128xf32>
    %32 = arith.select %29, %31, %30 : vector<8x128xi1>, vector<8x128xf32>
    %c0_4 = arith.constant 0 : index
    %c0_5 = arith.constant 0 : index
    %33 = vector.load %arg3[%c0_4, %c0_5] : memref<8x128xf32, #tpu.memory_space<vmem>>, vector<8x128xf32>
    tpu.vector_store %arg3[%c0_4, %c0_5], %32 {strides = array<i32>} : memref<8x128xf32, #tpu.memory_space<vmem>>, vector<8x128xf32>,
    return
  }
  func.func @transform_0(%arg0: i32) -> i32 {
    %c0_i32 = arith.constant 0 : i32
    %c0_i32_0 = arith.constant 0 : i32
    return %c0_i32 : i32
  }
  func.func @transform_1(%arg0: i32) -> (i32, i32) {
    %c0_i32 = arith.constant 0 : i32
    %c0_i32_0 = arith.constant 0 : i32
    return %arg0, %c0_i32 : i32, i32
  }
  func.func @transform_2(%arg0: i32) -> (i32, i32) {
    %c0_i32 = arith.constant 0 : i32
    %c0_i32_0 = arith.constant 0 : i32
    return %arg0, %c0_i32 : i32, i32
  }
}

</mosaic_0001>

<llo_original>
// kernel: tpu_custom_call.1
$region0: #{tpu_custom_call.1}
  #allocation0 [shape = 'u32[]', space=smem, size = 0x4, offset = 0x4, fixed_abs, tag = 'smem constant byte address 0x4 - core index']
  #allocation1 [shape = 'u32[144,128]{1,0:T(1,128)}', space=vmem, size = 0x12000, scoped, tag = 'internal scratch']
  #allocation2 [shape = 's32[1]{0:T(128)S(6)}', space=smem, size = 0x200, scoped, tag = 'scoped memory for tpu_custom_call.1']
  %s0 = inlined_call_operand.<no memory space> [shape: s32[1], index: 0, kind: input, shape index: {}]
  %s1 = inlined_call_operand.hbm [shape: f32[8,128], index: 1, kind: input, shape index: {}]
  %s2 = inlined_call_operand.hbm [shape: f32[8,128], index: 2, kind: output, shape index: {}]
  %s3 = sld [smem:[#allocation0]]
  $region22: #{tpu_custom_call.1} parent=0
    _
  %s5 = ssub.s32 1, %s3
  %s6 = scalar_select 0, %s5, %s3
  %7 = sst [smem:[#allocation2]] %s0
  $region1: #{tpu_custom_call.1} parent=0
    #allocation3 [shape = 'u8[4096]{0}', space=vmem, size = 0x1000, scoped, tag = 'input window, operand 1, single buffered']
    #allocation4 [shape = 's32[1]{0}', space=sflag, size = 0x4, scoped, tag = 'scoped memory for tpu_custom_call.1']
    #allocation5 [shape = 's32[1]{0}', space=sflag, size = 0x4, scoped, tag = 'scoped memory for tpu_custom_call.1']
    #allocation6 [shape = 'u8[4096]{0}', space=vmem, size = 0x1000, scoped, tag = 'output window, operand 0, single buffered']
    %8 = vsyncpa [#allocation4], 0
    %9 = vsyncpa [#allocation5], 0
    // Predicated region
    $region2: #{tpu_custom_call.1} parent=1 // pred_check
      _
    $region3: #{tpu_custom_call.1} parent=1 // pred_check_branch
      %11 = sbr.rel (0) target = $region5
    $region4: #{tpu_custom_call.1} parent=1 // pred_region
      _
    $region5: #{tpu_custom_call.1} parent=1 // pred_fallthru
      _
    // Predicated region
    $region6: #{tpu_custom_call.1} parent=1 // pred_check
      _
    $region7: #{tpu_custom_call.1} parent=1 // pred_check_branch
      %13 = sbr.rel (0) target = $region9
    $region8: #{tpu_custom_call.1} parent=1 // pred_region
      %s15 = ssub.s32 128, 128
      %16 = vsyncadd [#allocation4], %s15
      %s18 = sshll.u32 [#allocation3], 4
      %s19 = int_to_ptr.vmem [resolvable:$true] %s18
      %21 = dma.hbm_to_vmem [thread:$0]  %s1, 128, %s19, [#allocation4]
    $region9: #{tpu_custom_call.1} parent=1 // pred_fallthru
      _
    // Predicated region
    $region10: #{tpu_custom_call.1} parent=1 // pred_check
      _
    $region11: #{tpu_custom_call.1} parent=1 // pred_check_branch
      %23 = sbr.rel (0) target = $region13
    $region12: #{tpu_custom_call.1} parent=1 // pred_region
      %24 = dma.done [#allocation4], 128
    $region13: #{tpu_custom_call.1} parent=1 // pred_fallthru
      _
    %v25 = vlaneseq
    %v26 = vshrl.u32 %v25, 7
    %v27 = vlaneseq
    %v28 = vand.u32 %v27, 127
    %s29 = smul.u32 0, 8
    %v30 = vstv %s29
    %v31 = vadd.s32 %v30, %v26
    %v32 = vmul.u32 %v31, 128
    %v33 = vadd.s32 %v32, %v28
    %s34 = sld [smem:[#allocation2]]
    %s35 = sadd.s32 %s34, 1
    %s36 = smul.u32 %s35, 2654435769
    %v37 = vstv %s36
    %v38 = vadd.s32 %v33, %v37
    %v39 = vshrl.u32 %v38, 16
    %v40 = vxor.u32 %v38, %v39
    %v41 = vmul.u32 %v40, 2146121005
    %v42 = vshrl.u32 %v41, 15
    %v43 = vxor.u32 %v41, %v42
    %v44 = vmul.u32 %v43, 2221713035
    %v45 = vshrl.u32 %v44, 16
    %v46 = vxor.u32 %v44, %v45
    %v47 = vshrl.u32 %v46, 8
    %vm48 = vcmp.gt.s32.totalorder %v47, 11744051
    %v49 = vld [vmem:[#allocation3] sm:$0xff]
    %v50 = vsel %vm48, 0.0, %v49
    %51 = vst [vmem:[#allocation6] sm:$0xff] %v50
    // Predicated region
    $region14: #{tpu_custom_call.1} parent=1 // pred_check
      _
    $region15: #{tpu_custom_call.1} parent=1 // pred_check_branch
      %53 = sbr.rel (0) target = $region17
    $region16: #{tpu_custom_call.1} parent=1 // pred_region
      %s55 = ssub.s32 128, 128
      %56 = vsyncadd [#allocation5], %s55
      %s58 = sshll.u32 [#allocation6], 4
      %s59 = int_to_ptr.vmem [resolvable:$true] %s58
      %61 = dma.vmem_to_hbm [thread:$0]  %s59, 128, %s2, [#allocation5]
    $region17: #{tpu_custom_call.1} parent=1 // pred_fallthru
      _
    // Predicated region
    $region18: #{tpu_custom_call.1} parent=1 // pred_check
      _
    $region19: #{tpu_custom_call.1} parent=1 // pred_check_branch
      %63 = sbr.rel (0) target = $region21
    $region20: #{tpu_custom_call.1} parent=1 // pred_region
      %64 = dma.done [#allocation5], 128
    $region21: #{tpu_custom_call.1} parent=1 // pred_fallthru
      _
    %65 = vsyncpa [#allocation4], 1
    %66 = vsyncpa [#allocation5], 1

</llo_original>
